<compile_context>
chip_gen: v7x
topology: tpu7x:2x2x1
jax: 0.10.0
libtpu: 0.0.40
codegen_flags: <defaults>
</compile_context>

<pallas_src>
import math
import functools

import jax
import jax.numpy as jnp
from jax.experimental import pallas as pl
from jax.experimental.pallas import tpu as pltpu


# --------------------------------------------------------------------------------------
# Kernels
# --------------------------------------------------------------------------------------
def _fused_cosine_kernel(x_ref, w_ref, b_ref, o_ref, xn_ref, *, l2_eps):
    # x_ref:  (tb, D)  f32   input tile
    # w_ref:  (to, D)  bf16  weight tile, already L2-row-normalized and scaled by 1/T
    # b_ref:  (1, to)  f32   bias tile
    # o_ref:  (tb, to)       output tile
    # xn_ref: (tb, D)  bf16  scratch: normalized x tile, reused across the O tiles of a batch tile

    # Normalize x only once per batch tile (first O tile of the inner, sequential j loop).
    @pl.when(pl.program_id(1) == 0)
    def _():
        x = x_ref[...].astype(jnp.float32)
        # Fused LayerNorm(affine=False) + F.normalize(dim=1): the LN 1/sqrt(var+eps) factor
        # cancels inside the subsequent L2 normalization -> centered / max(||centered||, eps).
        mean = jnp.mean(x, axis=-1, keepdims=True)
        centered = x - mean
        ss = jnp.sum(centered * centered, axis=-1, keepdims=True)
        inv_norm = jax.lax.rsqrt(jnp.maximum(ss, l2_eps * l2_eps))  # EUP rsqrt
        # TODO(synk): dropout omitted (eval mode / dropout=0 -> identity).
        xn_ref[...] = (centered * inv_norm).astype(jnp.bfloat16)

    # bf16 MXU operands, f32 accumulation; contraction of both minor dims -> no weight transpose.
    acc = jax.lax.dot_general(
        xn_ref[...], w_ref[...],
        dimension_numbers=(((1,), (1,)), ((), ())),
        preferred_element_type=jnp.float32,
    )
    o_ref[...] = (acc + b_ref[...]).astype(o_ref.dtype)


def _normalize_kernel(x_ref, xn_ref, *, l2_eps):
    # Standalone LayerNorm + L2-normalize (used by the two-pass path and only_feat).
    x = x_ref[...].astype(jnp.float32)
    mean = jnp.mean(x, axis=-1, keepdims=True)
    centered = x - mean
    ss = jnp.sum(centered * centered, axis=-1, keepdims=True)
    inv_norm = jax.lax.rsqrt(jnp.maximum(ss, l2_eps * l2_eps))
    # TODO(synk): dropout omitted (eval mode / dropout=0 -> identity).
    xn_ref[...] = (centered * inv_norm).astype(xn_ref.dtype)


def _matmul_bias_kernel(xn_ref, w_ref, b_ref, o_ref):
    # xn_ref: (tb, D) bf16, w_ref: (to, D) bf16 pre-scaled, b_ref: (1, to) f32.
    acc = jax.lax.dot_general(
        xn_ref[...], w_ref[...],
        dimension_numbers=(((1,), (1,)), ((), ())),
        preferred_element_type=jnp.float32,
    )
    o_ref[...] = (acc + b_ref[...]).astype(o_ref.dtype)


# --------------------------------------------------------------------------------------
# Tiling / hardware helpers
# --------------------------------------------------------------------------------------
def _tpu_defaults():
    """(physical VMEM bytes, batch-tile cap, min #batch tiles) -- generation aware."""
    vmem = 64 << 20  # conservative fallback: v7x per-TensorCore VMEM
    try:
        vmem = int(pltpu.get_tpu_info().vmem_capacity_bytes)
    except Exception:
        pass
    kind = ""
    try:
        kind = jax.devices()[0].device_kind.lower()
    except Exception:
        pass
    if "v5" in kind:
        return vmem, 256, 1    # 197 TF/s vs ~0.82 TB/s -> knee ~240 rows with bf16 weights
    if "v6" in kind:
        return vmem, 1024, 1   # 918 TF/s vs ~1.4 TB/s -> knee ~700 rows; 128 MiB VMEM
    return vmem, 512, 2        # v7x (2 TCs share HBM, 64 MiB VMEM) / unknown


def _pick_tile(dim, cap, align):
    """Largest divisor of `dim` that is <= cap and a multiple of `align`; falls back to the
    full dimension if none exists (a full-extent block is always a legal TPU block)."""
    if dim <= cap:
        return dim
    t = (cap // align) * align
    while t >= align:
        if dim % t == 0:
            return t
        t -= align
    return dim


def _vmem_need_fused(tb, to, D):
    return (2 * tb * D * 4        # x tile (f32, double-buffered)
            + 2 * to * D * 2      # weight tile (bf16, double-buffered)
            + 2 * tb * to * 4     # output tile (double-buffered)
            + 2 * to * 4          # bias tile
            + tb * D * 2)         # bf16 normalized-x scratch


def _vmem_need_matmul(tb, to, D):
    return (2 * tb * D * 2        # xn tile (bf16)
            + 2 * to * D * 2      # weight tile (bf16)
            + 2 * tb * to * 4     # output tile
            + 2 * to * 4)         # bias tile


def _vmem_limit(need, budget):
    return int(min(max(int(need * 1.25) + (2 << 20), 32 << 20), budget))


# --------------------------------------------------------------------------------------
# Wrappers
# --------------------------------------------------------------------------------------
def _normalize_rows(x, *, out_dtype, l2_eps=1e-12, tb=None):
    """Row-wise LayerNorm(affine=False) + L2 normalize -> (B, D) in out_dtype."""
    B, D = x.shape
    vmem_cap, tb_cap, _ = _tpu_defaults()
    budget = int(0.8 * vmem_cap)

    def need(t):  # conservative: treat output tile as f32
        return 2 * t * D * 4 + 2 * t * D * 4

    if tb is None:
        tb = _pick_tile(B, max(tb_cap, 8), 8)
        while tb > 8 and need(tb) > budget:
            smaller = _pick_tile(B, tb // 2, 8)
            if smaller >= tb:
                break
            tb = smaller
    assert B % tb == 0

    return pl.pallas_call(
        functools.partial(_normalize_kernel, l2_eps=l2_eps),
        out_shape=jax.ShapeDtypeStruct((B, D), out_dtype),
        grid_spec=pltpu.PrefetchScalarGridSpec(
            num_scalar_prefetch=0,
            grid=(B // tb,),
            in_specs=[pl.BlockSpec((tb, D), lambda i: (i, 0))],
            out_specs=pl.BlockSpec((tb, D), lambda i: (i, 0)),
        ),
        compiler_params=pltpu.CompilerParams(
            dimension_semantics=("parallel",),
            vmem_limit_bytes=_vmem_limit(need(tb), budget),
        ),
    )(x)


def cosine_linear(x, weight, bias=None, *, T=1.0, tb=None, to=None,
                  only_feat=False, force_two_pass=None, l2_eps=1e-12):
    """x: (B, D), weight: (O, D), bias: (O,) or None -> (B, O).

    Matches CosineLinear.forward in eval mode (dropout is identity)."""
    B, D = x.shape
    O, D2 = weight.shape
    assert D == D2

    if only_feat:
        return _normalize_rows(x, out_dtype=x.dtype, l2_eps=l2_eps, tb=tb)

    vmem_cap, tb_cap, min_batch_tiles = _tpu_defaults()
    budget = int(0.8 * vmem_cap)

    # Fold the per-row L2 normalization and the 1/T scale into the weight ONCE in the wrapper and
    # ship it as bf16 (halves the dominant HBM stream; no per-step scale DMA / multiply).
    w_f32 = weight.astype(jnp.float32)
    w_norm = jnp.sqrt(jnp.sum(w_f32 * w_f32, axis=1, keepdims=True))
    w_bf16 = (w_f32 * ((1.0 / float(T)) / jnp.maximum(w_norm, l2_eps))).astype(jnp.bfloat16)

    if bias is None:
        bias = jnp.zeros((O,), jnp.float32)
    bias2d = bias.reshape(1, O).astype(jnp.float32)

    # ---- output-feature tile --------------------------------------------------------------
    weight_resident = (2 * O * D * 2) <= budget // 4  # whole bf16 weight (double-buffered) is cheap
    if to is None:
        to = O if weight_resident else _pick_tile(O, 512, 128)

    # ---- path selection ---------------------------------------------------------------------
    tb_guess = tb if tb is not None else _pick_tile(B, tb_cap, 8)
    if force_two_pass is not None:
        two_pass = bool(force_two_pass)
    elif weight_resident or to == O:
        two_pass = False  # weight block index is constant over the grid -> DMA'd exactly once
    else:
        # Fused path re-reads the weight once per batch tile; two-pass path re-reads the bf16
        # activations once per O tile (plus one normalization pass). Pick the cheaper stream.
        fused_w_bytes = pl.cdiv(B, tb_guess) * O * D * 2
        two_pass_bytes = pl.cdiv(O, to) * B * D * 2 + B * D * (4 + 2)
        two_pass = two_pass_bytes < fused_w_bytes

    # ---- path 1: single fused kernel ----------------------------------------------------------
    if not two_pass:
        if tb is None:
            tb = tb_guess
            while tb > 8 and _vmem_need_fused(tb, to, D) > budget:
                smaller = _pick_tile(B, tb // 2, 8)
                if smaller >= tb:
                    break
                tb = smaller
            # Give v7x's second TensorCore a batch tile to work on (megacore 'parallel' axis).
            if (min_batch_tiles > 1 and B // tb < min_batch_tiles
                    and B >= 256 and (B // 2) % 8 == 0):
                tb = B // 2
        assert B % tb == 0 and O % to == 0

        kernel = functools.partial(_fused_cosine_kernel, l2_eps=l2_eps)
        return pl.pallas_call(
            kernel,
            out_shape=jax.ShapeDtypeStruct((B, O), x.dtype),
            grid_spec=pltpu.PrefetchScalarGridSpec(
                num_scalar_prefetch=0,
                grid=(B // tb, O // to),
                in_specs=[
                    pl.BlockSpec((tb, D), lambda i, j: (i, 0)),  # x tile (constant over j)
                    pl.BlockSpec((to, D), lambda i, j: (j, 0)),  # pre-scaled bf16 weight tile
                    pl.BlockSpec((1, to), lambda i, j: (0, j)),  # bias tile
                ],
                out_specs=pl.BlockSpec((tb, to), lambda i, j: (i, j)),
                scratch_shapes=[pltpu.VMEM((tb, D), jnp.bfloat16)],
            ),
            compiler_params=pltpu.CompilerParams(
                # j must stay sequential: the xn scratch is written only at j == 0.
                dimension_semantics=("parallel", "arbitrary"),
                vmem_limit_bytes=_vmem_limit(_vmem_need_fused(tb, to, D), budget),
            ),
        )(x, w_bf16, bias2d)

    # ---- path 2: pre-normalize (bf16) + weight-major matmul grid ------------------------------
    # The weight tile is the slow-varying operand (constant over the inner batch axis), so the
    # full weight is streamed from HBM only once in total instead of once per batch tile.
    xn = _normalize_rows(x, out_dtype=jnp.bfloat16, l2_eps=l2_eps)
    if tb is None:
        tb = tb_guess
        while tb > 8 and _vmem_need_matmul(tb, to, D) > budget:
            smaller = _pick_tile(B, tb // 2, 8)
            if smaller >= tb:
                break
            tb = smaller
    assert B % tb == 0 and O % to == 0

    return pl.pallas_call(
        _matmul_bias_kernel,
        out_shape=jax.ShapeDtypeStruct((B, O), x.dtype),
        grid_spec=pltpu.PrefetchScalarGridSpec(
            num_scalar_prefetch=0,
            grid=(O // to, B // tb),  # O tiles outer -> weight tile resident over inner axis
            in_specs=[
                pl.BlockSpec((tb, D), lambda j, i: (i, 0)),  # bf16 normalized activations
                pl.BlockSpec((to, D), lambda j, i: (j, 0)),  # weight tile (constant over i)
                pl.BlockSpec((1, to), lambda j, i: (0, j)),  # bias tile
            ],
            out_specs=pl.BlockSpec((tb, to), lambda j, i: (i, j)),
        ),
        compiler_params=pltpu.CompilerParams(
            dimension_semantics=("parallel", "parallel"),
            vmem_limit_bytes=_vmem_limit(_vmem_need_matmul(tb, to, D), budget),
        ),
    )(xn, w_bf16, bias2d)


def cosine_linear_ref(x, weight, bias, *, T=1.0):
    """Pure-JAX reference matching the PyTorch forward (LN eps=1e-5, L2 eps=1e-12)."""
    mean = jnp.mean(x, axis=-1, keepdims=True)
    var = jnp.mean((x - mean) ** 2, axis=-1, keepdims=True)
    xn = (x - mean) / jnp.sqrt(var + 1e-5)
    xn = xn / jnp.maximum(jnp.linalg.norm(xn, axis=1, keepdims=True), 1e-12)
    wn = weight / jnp.maximum(jnp.linalg.norm(weight, axis=1, keepdims=True), 1e-12)
    out = xn @ wn.T / T
    return out + bias


if __name__ == "__main__":
    # --- small shapes consistent with CosineLinear(in_features, out_features) ---------------
    in_features = 32
    out_features = 16
    batch = 8
    T = 1.0

    key = jax.random.PRNGKey(0)
    kx, kw, kb = jax.random.split(key, 3)

    # Deterministic init mirroring reset_parameters():
    #   kaiming_uniform_(a=sqrt(5)) -> U(-1/sqrt(fan_in), 1/sqrt(fan_in))
    fan_in = in_features
    w_bound = math.sqrt(6.0 / ((1.0 + 5.0) * fan_in))  # == 1/sqrt(fan_in)
    weight = jax.random.uniform(
        kw, (out_features, in_features), jnp.float32, -w_bound, w_bound)
    b_bound = 1.0 / math.sqrt(fan_in)
    bias = jax.random.uniform(kb, (out_features,), jnp.float32, -b_bound, b_bound)
    x = jax.random.normal(kx, (batch, in_features), jnp.float32)

    out = jax.block_until_ready(cosine_linear(x, weight, bias, T=T))
    ref = cosine_linear_ref(x, weight, bias, T=T)
    assert out.shape == (batch, out_features)
    # bf16 MXU operands (f32 accumulation): relaxed tolerance vs the f32 reference.
    assert jnp.allclose(out, ref, atol=2e-2, rtol=2e-2), "fused path mismatch vs reference"

    # --- exercise the multi-tile fused path (xn scratch reuse across O tiles) and the
    # --- two-pass weight-major path on a slightly larger (still small) problem. -------------
    B2, D2, O2 = 256, 256, 384
    k1, k2, k3 = jax.random.split(jax.random.PRNGKey(0), 3)
    x2 = jax.random.normal(k1, (B2, D2), jnp.float32)
    w2 = jax.random.normal(k2, (O2, D2), jnp.float32) * 0.05
    b2 = jax.random.normal(k3, (O2,), jnp.float32) * 0.1
    ref2 = cosine_linear_ref(x2, w2, b2, T=2.0)

    out_fused = jax.block_until_ready(
        cosine_linear(x2, w2, b2, T=2.0, tb=128, to=128, force_two_pass=False))
    assert jnp.allclose(out_fused, ref2, atol=2e-2, rtol=2e-2), "multi-tile fused path mismatch"

    out_2pass = jax.block_until_ready(
        cosine_linear(x2, w2, b2, T=2.0, tb=128, to=128, force_two_pass=True))
    assert jnp.allclose(out_2pass, ref2, atol=2e-2, rtol=2e-2), "two-pass path mismatch"

    print("KERNEL_OK")
</pallas_src>

<mosaic_0001>
module attributes {stable_mosaic.version = 11 : i64} {
  func.func @_fused_cosine_kernel(%arg0: i32, %arg1: i32, %arg2: memref<8x32xf32, #tpu.memory_space<vmem>>, %arg3: memref<16x32xbf16, #tpu.memory_space<vmem>>, %arg4: memref<1x16xf32, #tpu.memory_space<vmem>>, %arg5: memref<8x16xf32, #tpu.memory_space<vmem>>, %arg6: memref<8x32xbf16, #tpu.memory_space<vmem>>) attributes {dimension_semantics = [#tpu.dimension_semantics<parallel>, #tpu.dimension_semantics<arbitrary>], iteration_bounds = array<i64: 1, 1>, scalar_prefetch = 0 : i64, scratch_operands = 1 : i64, tpu.core_type = #tpu.core_type<tc>, window_params = [{transform_indices = @transform_0, window_bounds = array<i64: 8, 32>}, {transform_indices = @transform_1, window_bounds = array<i64: 16, 32>}, {transform_indices = @transform_2, window_bounds = array<i64: 1, 16>}, {transform_indices = @transform_3, window_bounds = array<i64: 8, 16>}]} {
    %c0_i32 = arith.constant 0 : i32
    %0 = arith.cmpi eq, %arg1, %c0_i32 : i32
    %1 = arith.extui %0 : i1 to i32
    %c0_i32_0 = arith.constant 0 : i32
    %2 = arith.cmpi ne, %1, %c0_i32_0 : i32
    scf.if %2 {
      %c0_8 = arith.constant 0 : index
      %c0_9 = arith.constant 0 : index
      %10 = vector.load %arg2[%c0_8, %c0_9] : memref<8x32xf32, #tpu.memory_space<vmem>>, vector<8x32xf32>
      %cst_10 = arith.constant dense<0.000000e+00> : vector<8xf32>
      %11 = vector.multi_reduction <add>, %10, %cst_10 [1] : vector<8x32xf32> to vector<8xf32>
      %12 = vector.shape_cast %11 : vector<8xf32> to vector<8x1xf32>
      %cst_11 = arith.constant 3.200000e+01 : f32
      %13 = vector.broadcast %cst_11 : f32 to vector<8x1xf32>
      %14 = arith.divf %12, %13 : vector<8x1xf32>
      %15 = vector.broadcast %14 : vector<8x1xf32> to vector<8x32xf32>
      %16 = arith.subf %10, %15 : vector<8x32xf32>
      %17 = arith.mulf %16, %16 : vector<8x32xf32>
      %cst_12 = arith.constant dense<0.000000e+00> : vector<8xf32>
      %18 = vector.multi_reduction <add>, %17, %cst_12 [1] : vector<8x32xf32> to vector<8xf32>
      %19 = vector.shape_cast %18 : vector<8xf32> to vector<8x1xf32>
      %cst_13 = arith.constant 1.000000e-24 : f32
      %20 = vector.broadcast %cst_13 : f32 to vector<8x1xf32>
      %21 = arith.maximumf %19, %20 : vector<8x1xf32>
      %22 = math.rsqrt %21 : vector<8x1xf32>
      %23 = vector.broadcast %22 : vector<8x1xf32> to vector<8x32xf32>
      %24 = arith.mulf %16, %23 : vector<8x32xf32>
      %25 = arith.truncf %24 : vector<8x32xf32> to vector<8x32xbf16>
      %c0_14 = arith.constant 0 : index
      %c0_15 = arith.constant 0 : index
      %26 = vector.load %arg6[%c0_14, %c0_15] : memref<8x32xbf16, #tpu.memory_space<vmem>>, vector<8x32xbf16>
      tpu.vector_store %arg6[%c0_14, %c0_15], %25 {strides = array<i32>} : memref<8x32xbf16, #tpu.memory_space<vmem>>, vector<8x32xbf16>,
    } else {
    }
    %c0 = arith.constant 0 : index
    %c0_1 = arith.constant 0 : index
    %3 = vector.load %arg6[%c0, %c0_1] : memref<8x32xbf16, #tpu.memory_space<vmem>>, vector<8x32xbf16>
    %c0_2 = arith.constant 0 : index
    %c0_3 = arith.constant 0 : index
    %4 = vector.load %arg3[%c0_2, %c0_3] : memref<16x32xbf16, #tpu.memory_space<vmem>>, vector<16x32xbf16>
    %cst = arith.constant dense<0.000000e+00> : vector<8x16xf32>
    %5 = tpu.matmul %3, %4, %cst {dimension_numbers = #tpu.dot_dimension_numbers<[1], [1], [0], [0], [0, 0, 1, 0], [], []>} : vector<8x32xbf16>, vector<16x32xbf16>, vector<8x16xf32> -> vector<8x16xf32>
    %c0_4 = arith.constant 0 : index
    %c0_5 = arith.constant 0 : index
    %6 = vector.load %arg4[%c0_4, %c0_5] : memref<1x16xf32, #tpu.memory_space<vmem>>, vector<1x16xf32>
    %7 = vector.broadcast %6 : vector<1x16xf32> to vector<8x16xf32>
    %8 = arith.addf %5, %7 : vector<8x16xf32>
    %c0_6 = arith.constant 0 : index
    %c0_7 = arith.constant 0 : index
    %9 = vector.load %arg5[%c0_6, %c0_7] : memref<8x16xf32, #tpu.memory_space<vmem>>, vector<8x16xf32>
    tpu.vector_store %arg5[%c0_6, %c0_7], %8 {strides = array<i32>} : memref<8x16xf32, #tpu.memory_space<vmem>>, vector<8x16xf32>,
    return
  }
  func.func @transform_0(%arg0: i32, %arg1: i32) -> (i32, i32) {
    %c0_i32 = arith.constant 0 : i32
    %c0_i32_0 = arith.constant 0 : i32
    return %arg0, %c0_i32 : i32, i32
  }
  func.func @transform_1(%arg0: i32, %arg1: i32) -> (i32, i32) {
    %c0_i32 = arith.constant 0 : i32
    %c0_i32_0 = arith.constant 0 : i32
    return %arg1, %c0_i32 : i32, i32
  }
  func.func @transform_2(%arg0: i32, %arg1: i32) -> (i32, i32) {
    %c0_i32 = arith.constant 0 : i32
    %c0_i32_0 = arith.constant 0 : i32
    return %c0_i32, %arg1 : i32, i32
  }
  func.func @transform_3(%arg0: i32, %arg1: i32) -> (i32, i32) {
    %c0_i32 = arith.constant 0 : i32
    return %arg0, %arg1 : i32, i32
  }
}

</mosaic_0001>

<llo_original>
// kernel: tpu_custom_call.1
$region0: #{tpu_custom_call.1}
  #allocation0 [shape = 'u32[]', space=smem, size = 0x4, offset = 0x4, fixed_abs, tag = 'smem constant byte address 0x4 - core index']
  #allocation1 [shape = 'u32[144,128]{1,0:T(1,128)}', space=vmem, size = 0x12000, scoped, tag = 'internal scratch']
  #allocation2 [shape = 'bf16[8,32]{1,0:T(8,128)(2,1)}', space=vmem, size = 0x800, scoped, tag = 'scratch operand']
  %s0 = inlined_call_operand.hbm [shape: f32[8,32], index: 0, kind: input, shape index: {}]
  %s1 = inlined_call_operand.hbm [shape: bf16[16,32], index: 1, kind: input, shape index: {}]
  %s2 = inlined_call_operand.vmem [shape: f32[1,16], index: 2, kind: input, shape index: {}]
  %s3 = inlined_call_operand.hbm [shape: f32[8,16], index: 3, kind: output, shape index: {}]
  %s4 = sld [smem:[#allocation0]]
  $region34: #{tpu_custom_call.1} parent=0
    _
  %s6 = ssub.s32 1, %s4
  %s7 = scalar_select 0, %s6, %s4
  $region1: #{tpu_custom_call.1} parent=0
    #allocation3 [shape = 'u8[4096]{0}', space=vmem, size = 0x1000, scoped, tag = 'input window, operand 0, single buffered']
    #allocation4 [shape = 's32[1]{0}', space=sflag, size = 0x4, scoped, tag = 'scoped memory for tpu_custom_call.1']
    #allocation5 [shape = 's32[1]{0}', space=sflag, size = 0x4, scoped, tag = 'scoped memory for tpu_custom_call.1']
    #allocation6 [shape = 'u8[4096]{0}', space=vmem, size = 0x1000, scoped, tag = 'input window, operand 1, single buffered']
    #allocation7 [shape = 's32[1]{0}', space=sflag, size = 0x4, scoped, tag = 'scoped memory for tpu_custom_call.1']
    #allocation8 [shape = 'u8[4096]{0}', space=vmem, size = 0x1000, scoped, tag = 'output window, operand 0, single buffered']
    %8 = vsyncpa [#allocation4], 0
    %9 = vsyncpa [#allocation7], 0
    %10 = vsyncpa [#allocation5], 0
    // Predicated region
    $region2: #{tpu_custom_call.1} parent=1 // pred_check
      _
    $region3: #{tpu_custom_call.1} parent=1 // pred_check_branch
      %12 = sbr.rel (0) target = $region5
    $region4: #{tpu_custom_call.1} parent=1 // pred_region
      %s14 = ssub.s32 128, 128
      %15 = vsyncadd [#allocation4], %s14
      %s17 = sshll.u32 [#allocation3], 4
      %s18 = int_to_ptr.vmem [resolvable:$true] %s17
      %20 = dma.hbm_to_vmem [thread:$0]  %s0, 128, %s18, [#allocation4]
    $region5: #{tpu_custom_call.1} parent=1 // pred_fallthru
      _
    // Predicated region
    $region6: #{tpu_custom_call.1} parent=1 // pred_check
      _
    $region7: #{tpu_custom_call.1} parent=1 // pred_check_branch
      %22 = sbr.rel (0) target = $region9
    $region8: #{tpu_custom_call.1} parent=1 // pred_region
      %s24 = ssub.s32 128, 128
      %25 = vsyncadd [#allocation7], %s24
      %s26 = sshll.u32 [#allocation6], 4
      %s27 = int_to_ptr.vmem [resolvable:$true] %s26
      %32 = dma.hbm_to_vmem [thread:$0]  %s1, 128, %s27, [#allocation7], 64, 64, 4
    $region9: #{tpu_custom_call.1} parent=1 // pred_fallthru
      _
    // Predicated region
    $region10: #{tpu_custom_call.1} parent=1 // pred_check
      _
    $region11: #{tpu_custom_call.1} parent=1 // pred_check_branch
      %34 = sbr.rel (0) target = $region13
    $region12: #{tpu_custom_call.1} parent=1 // pred_region
      _
    $region13: #{tpu_custom_call.1} parent=1 // pred_fallthru
      _
    // Predicated region
    $region14: #{tpu_custom_call.1} parent=1 // pred_check
      _
    $region15: #{tpu_custom_call.1} parent=1 // pred_check_branch
      %36 = sbr.rel (0) target = $region17
    $region16: #{tpu_custom_call.1} parent=1 // pred_region
      %37 = dma.done [#allocation4], 128
    $region17: #{tpu_custom_call.1} parent=1 // pred_fallthru
      _
    // Predicated region
    $region18: #{tpu_custom_call.1} parent=1 // pred_check
      _
    $region19: #{tpu_custom_call.1} parent=1 // pred_check_branch
      %39 = sbr.rel (0) target = $region21
    $region20: #{tpu_custom_call.1} parent=1 // pred_region
      %40 = dma.done [#allocation7], 128
    $region21: #{tpu_custom_call.1} parent=1 // pred_fallthru
      _
    %p42 = scmp.eq.s32.totalorder 0, 0
    // Predicated region
    $region22: #{tpu_custom_call.1} parent=1 // pred_check
      %p43 = pneg %p42
    $region23: #{tpu_custom_call.1} parent=1 // pred_check_branch
      %45 = sbr.rel (%p43) target = $region25
    $region24: #{tpu_custom_call.1} parent=1 // pred_region
      %v46 = vld [vmem:[#allocation3] sm:$0xff]
      %vm47 = vcmask 261120
      %v48 = vsel %vm47, %v46, 0.0
      %49 = vadd.xlane.f32.xlu0 %v48
      %v50 = vpop.xlane.xlu0 %49
      %v51 = vrcp.pop 32.0
      %v52 = vmul.f32 %v50, %v51
      %v53 = vsub.f32 %v46, %v52
      %v54 = vmul.f32 %v53, %v53
      %v55 = vsel %vm47, %v54, 0.0
      %56 = vadd.xlane.f32.xlu0 %v55
      %v57 = vpop.xlane.xlu0 %56
      %v58 = vmax.f32 %v57, 1e-24
      %v59 = vrsqrt.pop %v58
      %v60 = vmul.f32 %v53, %v59
      %v61 = vpack.c.bf16 %v60, %v60
      %vm62 = vcmask 257024
      %63 = vst.msk [vmem:[#allocation2] sm:$0xf] %vm62, %v61
    $region25: #{tpu_custom_call.1} parent=1 // pred_fallthru
      _
    %v64 = vld [vmem:[#allocation2] sm:$0xf]
    %v65 = vld [vmem:[#allocation6] sm:$0xf]
    %v66 = vld [vmem:[#allocation6 + $0x4] sm:$0xf]
    %v67 = vld [vmem:[%s2] sm:$0x1]
    %v69 = vlaneseq
    %v70 = vshrl.u32 %v69, 7
    %v71 = vsub.s32 0, %v70
    %v72 = vrot.slane %v67, %v71
    %v76 = vunpack.c.l.b16 %v65
    %v77 = vunpack.c.l.b16 %v66
    %v78 = vpack.c.b16 %v77, %v76
    %vm79 = vcmask 261120
    %v81 = vsel %vm79, %v64, 0
    %v84 = vsel %vm79, %v78, 0
    %86 = vmatprep.subr.bf16.mxu0 0
    %87 = vmatpush1.bf16.xpose.msra.mxu0 %v84
    %88 = vmatprep.subr.bf16.mxu0 0
    %89 = vmatpush1.bf16.xpose.msra.mxu0 0
    %90 = vmatprep.subr.bf16.mxu0 0
    %91 = vmatpush1.bf16.xpose.msra.mxu0 0
    %92 = vmatprep.subr.bf16.mxu0 0
    %93 = vmatpush1.bf16.xpose.msra.mxu0 0
    %94 = vmatprep.subr.bf16.mxu0 0
    %95 = vmatpush1.bf16.xpose.msra.mxu0 0
    %96 = vmatprep.subr.bf16.mxu0 0
    %97 = vmatpush1.bf16.xpose.msra.mxu0 0
    %98 = vmatprep.subr.bf16.mxu0 0
    %99 = vmatpush1.bf16.xpose.msra.mxu0 0
    %100 = vmatprep.subr.bf16.mxu0 0
    %101 = vmatpush1.bf16.xpose.msra.mxu0 0
    %102 = vmatprep.subr.bf16.mxu0 0
    %103 = vmatpush1.bf16.xpose.msra.mxu0 0
    %104 = vmatprep.subr.bf16.mxu0 0
    %105 = vmatpush1.bf16.xpose.msra.mxu0 0
    %106 = vmatprep.subr.bf16.mxu0 0
    %107 = vmatpush1.bf16.xpose.msra.mxu0 0
    %108 = vmatprep.subr.bf16.mxu0 0
    %109 = vmatpush1.bf16.xpose.msra.mxu0 0
    %110 = vmatprep.subr.bf16.mxu0 0
    %111 = vmatpush1.bf16.xpose.msra.mxu0 0
    %112 = vmatprep.subr.bf16.mxu0 0
    %113 = vmatpush1.bf16.xpose.msra.mxu0 0
    %114 = vmatprep.subr.bf16.mxu0 0
    %115 = vmatpush1.bf16.xpose.msra.mxu0 0
    %116 = vmatprep.subr.bf16.mxu0 0
    %117 = vmatpush1.bf16.xpose.msra.mxu0 0
    %118 = vmatprep.mubr.bf16.mxu0 0
    %119 = vmatmul.mubr.bf16.gmra.mrb[0].mxu0 %v81
    %v120 = vpop.f32.mrb[0].mxu0
    %v121 = vadd.f32 %v72, %v120
    %v122 = vpop.f32.mrb[0].mxu0
    %v123 = vpop.f32.mrb[0].mxu0
    %v124 = vpop.f32.mrb[0].mxu0
    %125 = vdwg.mxu0
    %vm126 = vcmask 130048
    %127 = vst.msk [vmem:[#allocation8] sm:$0xff] %vm126, %v121
    // Predicated region
    $region26: #{tpu_custom_call.1} parent=1 // pred_check
      _
    $region27: #{tpu_custom_call.1} parent=1 // pred_check_branch
      %129 = sbr.rel (0) target = $region29
    $region28: #{tpu_custom_call.1} parent=1 // pred_region
      %s131 = ssub.s32 128, 128
      %132 = vsyncadd [#allocation5], %s131
      %s134 = sshll.u32 [#allocation8], 4
      %s135 = int_to_ptr.vmem [resolvable:$true] %s134
      %137 = dma.vmem_to_hbm [thread:$0]  %s135, 128, %s3, [#allocation5]
    $region29: #{tpu_custom_call.1} parent=1 // pred_fallthru
      _
    // Predicated region
    $region30: #{tpu_custom_call.1} parent=1 // pred_check
      _
    $region31: #{tpu_custom_call.1} parent=1 // pred_check_branch
      %139 = sbr.rel (0) target = $region33
    $region32: #{tpu_custom_call.1} parent=1 // pred_region
      %140 = dma.done [#allocation5], 128
    $region33: #{tpu_custom_call.1} parent=1 // pred_fallthru
      _
    %141 = vsyncpa [#allocation4], 1
    %142 = vsyncpa [#allocation7], 1
    %143 = vsyncpa [#allocation5], 1

</llo_original>
